<compile_context>
chip_gen: v6e
topology: v6e:2x2x1
jax: 0.10.0
libtpu: 0.0.40
codegen_flags: <defaults>
</compile_context>

<pallas_src>
import jax
import jax.numpy as jnp
from jax.experimental import pallas as pl
from jax.experimental.pallas import tpu as pltpu

_LANES = 128


def _round_up(n, m):
    return ((n + m - 1) // m) * m


def mlp_kernel(x_ref, w1_ref, b1_ref, w2_ref, b2_ref, w3_ref, b3_ref, o_ref):
    # x_ref: (TB, 10) batch tile, row-major as stored by the host.
    x = x_ref[...]
    # fc1: (v1, 10) . (TB, 10)^T -> (v1, TB): contract the shared feature dim
    # (same structure as the q @ k^T pattern).  From here on the batch lives in
    # lanes, so every intermediate vreg is densely used and the final store is
    # lane-dense.
    h1 = jax.lax.dot_general(
        w1_ref[...], x, (((1,), (1,)), ((), ())),
        preferred_element_type=jnp.float32)
    h1 = jnp.maximum(h1 + b1_ref[...], 0.0)            # f32 bias + ReLU (VPU)
    h1 = h1.astype(w2_ref.dtype)                       # bf16 on the MXU path, no-op in f32
    # fc2: (v2, v1) @ (v1, TB) -> (v2, TB)
    h2 = jnp.dot(w2_ref[...], h1, preferred_element_type=jnp.float32)
    h2 = jnp.maximum(h2 + b2_ref[...], 0.0)
    # fc4 (v2 -> 1): VPU multiply + XLU sublane reduce instead of an N=1 matmul.
    logits = jnp.sum(h2 * w3_ref[...], axis=0, keepdims=True) + b3_ref[0]
    o_ref[...] = jax.nn.sigmoid(logits)                # dense (1, TB) store


def net_forward(x, params, *, block_batch=2048, use_bf16=False):
    """x: (batch, 10) float32. params from init_params (torch layouts:
    w1 (v1,10), w2 (v2,v1) = nn.Linear.weight; b1 (v1,1), b2 (v2,1);
    w3 (v2,1) = fc4.weight.T; b3 (1,1)).  Returns (batch, 1) float32."""
    w1, b1, w2, b2, w3, b3 = (params[k] for k in ("w1", "b1", "w2", "b2", "w3", "b3"))
    batch, in_features = x.shape
    v1 = w1.shape[0]
    v2 = w2.shape[0]

    # Lane-aligned batch tiles, large enough to amortize the ~0.35us per-step overhead.
    tb = min(_round_up(block_batch, _LANES), _round_up(max(batch, 1), _LANES))
    padded = _round_up(max(batch, 1), tb)
    if padded != batch:
        x = jnp.pad(x, ((0, padded - batch), (0, 0)))
    num_tiles = padded // tb

    # Optional bf16 inputs for the MXU (v6e/v7x): halves HBM/VMEM traffic for x.
    mxu_dtype = jnp.bfloat16 if use_bf16 else jnp.float32
    x_in = x.astype(mxu_dtype)
    w1_in = w1.astype(mxu_dtype)
    w2_in = w2.astype(mxu_dtype)
    b3_s = b3.reshape((1,))  # scalar bias, passed via SMEM

    itemsize = 2 if use_bf16 else 4
    cost = pl.CostEstimate(
        flops=2 * padded * (in_features * v1 + v1 * v2 + v2),
        transcendentals=padded,  # one sigmoid per row
        bytes_accessed=(padded * in_features * itemsize          # x
                        + padded * 4                             # out
                        + (v1 * in_features + v2 * v1) * itemsize
                        + (v1 + v2 + v2 + 1) * 4))               # biases + w3

    out = pl.pallas_call(
        mlp_kernel,
        out_shape=jax.ShapeDtypeStruct((1, padded), jnp.float32),
        grid=(num_tiles,),
        in_specs=[
            pl.BlockSpec((tb, in_features), lambda i: (i, 0)),   # x: tiled over batch
            pl.BlockSpec((v1, in_features), lambda i: (0, 0)),   # w1: resident in VMEM
            pl.BlockSpec((v1, 1), lambda i: (0, 0)),             # b1: resident
            pl.BlockSpec((v2, v1), lambda i: (0, 0)),            # w2: resident
            pl.BlockSpec((v2, 1), lambda i: (0, 0)),             # b2: resident
            pl.BlockSpec((v2, 1), lambda i: (0, 0)),             # w3: resident
            pl.BlockSpec(memory_space=pltpu.MemorySpace.SMEM),   # b3: scalar in SMEM
        ],
        out_specs=pl.BlockSpec((1, tb), lambda i: (0, i)),       # lane-dense output slab
        compiler_params=pltpu.CompilerParams(
            dimension_semantics=("parallel",)),                  # v7x: 2 TCs split the batch
        cost_estimate=cost,
    )(x_in, w1_in, b1, w2_in, b2, w3, b3_s)

    return out[0, :batch].reshape(batch, 1)


def init_params(key, v1, v2):
    """Deterministic synthetic init, same shapes/semantics as the torch module.
    Weights are kept in torch's (out_features, in_features) layout; biases as
    columns; w3 is fc4.weight.T (v2, 1)."""
    k = jax.random.split(key, 6)

    def lin(kw, kb, fan_in, fan_out):
        bound = 1.0 / jnp.sqrt(fan_in)
        w = jax.random.uniform(kw, (fan_out, fan_in), jnp.float32, -bound, bound)
        b = jax.random.uniform(kb, (fan_out, 1), jnp.float32, -bound, bound)
        return w, b

    w1, b1 = lin(k[0], k[1], 10, v1)
    w2, b2 = lin(k[2], k[3], v1, v2)
    w3, b3 = lin(k[4], k[5], v2, 1)
    return {"w1": w1, "b1": b1, "w2": w2, "b2": b2, "w3": w3.T, "b3": b3}


def reference_forward(x, p):
    h1 = jnp.maximum(x @ p["w1"].T + p["b1"].T, 0.0)
    h2 = jnp.maximum(h1 @ p["w2"].T + p["b2"].T, 0.0)
    return jax.nn.sigmoid(h2 @ p["w3"] + p["b3"].T)


if __name__ == "__main__":
    v1, v2 = 32, 16
    batch = 8

    key = jax.random.PRNGKey(0)
    kx, kp = jax.random.split(key)
    x = jax.random.normal(kx, (batch, 10), dtype=jnp.float32)
    params = init_params(kp, v1, v2)

    # f32 path: exact torch-module numerics.
    out = jax.block_until_ready(net_forward(x, params))
    ref = reference_forward(x, params)
    assert out.shape == (batch, 1)
    assert jnp.allclose(out, ref, atol=1e-5, rtol=1e-5)

    # Multi-tile grid with a batch that is not a tile multiple (exercises padding
    # and the pipelined / resident-weight path).
    xb = jax.random.normal(kx, (300, 10), dtype=jnp.float32)
    outb = jax.block_until_ready(net_forward(xb, params, block_batch=128))
    assert jnp.allclose(outb, reference_forward(xb, params), atol=1e-5, rtol=1e-5)

    # bf16 MXU path (v6e/v7x HBM-traffic optimization); looser tolerance vs f32 ref.
    out16 = jax.block_until_ready(net_forward(x, params, use_bf16=True))
    assert jnp.allclose(out16, ref, atol=5e-2, rtol=5e-2)

    print("KERNEL_OK")
</pallas_src>

<mosaic_0001>
module attributes {stable_mosaic.version = 11 : i64} {
  func.func @mlp_kernel(%arg0: i32, %arg1: memref<128x10xf32, #tpu.memory_space<vmem>>, %arg2: memref<32x10xf32, #tpu.memory_space<vmem>>, %arg3: memref<32x1xf32, #tpu.memory_space<vmem>>, %arg4: memref<16x32xf32, #tpu.memory_space<vmem>>, %arg5: memref<16x1xf32, #tpu.memory_space<vmem>>, %arg6: memref<16x1xf32, #tpu.memory_space<vmem>>, %arg7: memref<1xf32, #tpu.memory_space<smem>>, %arg8: memref<1x128xf32, #tpu.memory_space<vmem>>) attributes {dimension_semantics = [#tpu.dimension_semantics<parallel>], iteration_bounds = array<i64: 1>, scalar_prefetch = 0 : i64, scratch_operands = 0 : i64, tpu.core_type = #tpu.core_type<tc>, window_params = [{transform_indices = @transform_0, window_bounds = array<i64: 128, 10>}, {pipeline_mode = #tpu.pipeline_mode<synchronous>, transform_indices = @transform_1, window_bounds = array<i64: 32, 10>}, {pipeline_mode = #tpu.pipeline_mode<synchronous>, transform_indices = @transform_2, window_bounds = array<i64: 32, 1>}, {pipeline_mode = #tpu.pipeline_mode<synchronous>, transform_indices = @transform_3, window_bounds = array<i64: 16, 32>}, {pipeline_mode = #tpu.pipeline_mode<synchronous>, transform_indices = @transform_4, window_bounds = array<i64: 16, 1>}, {pipeline_mode = #tpu.pipeline_mode<synchronous>, transform_indices = @transform_5, window_bounds = array<i64: 16, 1>}, {transform_indices = @transform_6, window_bounds = array<i64: 1>}, {transform_indices = @transform_7, window_bounds = array<i64: 1, 128>}]} {
    %c0 = arith.constant 0 : index
    %c0_0 = arith.constant 0 : index
    %0 = vector.load %arg1[%c0, %c0_0] : memref<128x10xf32, #tpu.memory_space<vmem>>, vector<128x10xf32>
    %c0_1 = arith.constant 0 : index
    %c0_2 = arith.constant 0 : index
    %1 = vector.load %arg2[%c0_1, %c0_2] : memref<32x10xf32, #tpu.memory_space<vmem>>, vector<32x10xf32>
    %cst = arith.constant dense<0.000000e+00> : vector<32x128xf32>
    %2 = tpu.matmul %1, %0, %cst {dimension_numbers = #tpu.dot_dimension_numbers<[1], [1], [0], [0], [0, 0, 1, 0], [], []>} : vector<32x10xf32>, vector<128x10xf32>, vector<32x128xf32> -> vector<32x128xf32>
    %c0_3 = arith.constant 0 : index
    %c0_4 = arith.constant 0 : index
    %3 = vector.load %arg3[%c0_3, %c0_4] : memref<32x1xf32, #tpu.memory_space<vmem>>, vector<32x1xf32>
    %4 = vector.broadcast %3 : vector<32x1xf32> to vector<32x128xf32>
    %5 = arith.addf %2, %4 : vector<32x128xf32>
    %cst_5 = arith.constant 0.000000e+00 : f32
    %6 = vector.broadcast %cst_5 : f32 to vector<32x128xf32>
    %7 = arith.maximumf %5, %6 : vector<32x128xf32>
    %c0_6 = arith.constant 0 : index
    %c0_7 = arith.constant 0 : index
    %8 = vector.load %arg4[%c0_6, %c0_7] : memref<16x32xf32, #tpu.memory_space<vmem>>, vector<16x32xf32>
    %cst_8 = arith.constant dense<0.000000e+00> : vector<16x128xf32>
    %9 = tpu.matmul %8, %7, %cst_8 {dimension_numbers = #tpu.dot_dimension_numbers<[1], [0], [0], [1], [0, 0, 1, 1], [], []>} : vector<16x32xf32>, vector<32x128xf32>, vector<16x128xf32> -> vector<16x128xf32>
    %c0_9 = arith.constant 0 : index
    %c0_10 = arith.constant 0 : index
    %10 = vector.load %arg5[%c0_9, %c0_10] : memref<16x1xf32, #tpu.memory_space<vmem>>, vector<16x1xf32>
    %11 = vector.broadcast %10 : vector<16x1xf32> to vector<16x128xf32>
    %12 = arith.addf %9, %11 : vector<16x128xf32>
    %cst_11 = arith.constant 0.000000e+00 : f32
    %13 = vector.broadcast %cst_11 : f32 to vector<16x128xf32>
    %14 = arith.maximumf %12, %13 : vector<16x128xf32>
    %c0_12 = arith.constant 0 : index
    %c0_13 = arith.constant 0 : index
    %15 = vector.load %arg6[%c0_12, %c0_13] : memref<16x1xf32, #tpu.memory_space<vmem>>, vector<16x1xf32>
    %16 = vector.broadcast %15 : vector<16x1xf32> to vector<16x128xf32>
    %17 = arith.mulf %14, %16 : vector<16x128xf32>
    %cst_14 = arith.constant dense<0.000000e+00> : vector<128xf32>
    %18 = vector.multi_reduction <add>, %17, %cst_14 [0] : vector<16x128xf32> to vector<128xf32>
    %19 = vector.shape_cast %18 : vector<128xf32> to vector<1x128xf32>
    %c0_15 = arith.constant 0 : index
    %20 = memref.load %arg7[%c0_15] : memref<1xf32, #tpu.memory_space<smem>>
    %21 = vector.broadcast %20 : f32 to vector<1x128xf32>
    %22 = arith.addf %19, %21 : vector<1x128xf32>
    %23 = arith.negf %22 : vector<1x128xf32>
    %24 = math.exp %23 : vector<1x128xf32>
    %cst_16 = arith.constant 1.000000e+00 : f32
    %25 = vector.broadcast %cst_16 : f32 to vector<1x128xf32>
    %26 = arith.addf %25, %24 : vector<1x128xf32>
    %27 = arith.divf %25, %26 : vector<1x128xf32>
    %c0_17 = arith.constant 0 : index
    %c0_18 = arith.constant 0 : index
    %28 = vector.load %arg8[%c0_17, %c0_18] : memref<1x128xf32, #tpu.memory_space<vmem>>, vector<1x128xf32>
    tpu.vector_store %arg8[%c0_17, %c0_18], %27 {strides = array<i32>} : memref<1x128xf32, #tpu.memory_space<vmem>>, vector<1x128xf32>,
    return
  }
  func.func @transform_0(%arg0: i32) -> (i32, i32) {
    %c0_i32 = arith.constant 0 : i32
    %c0_i32_0 = arith.constant 0 : i32
    return %arg0, %c0_i32 : i32, i32
  }
  func.func @transform_1(%arg0: i32) -> (i32, i32) {
    %c0_i32 = arith.constant 0 : i32
    %c0_i32_0 = arith.constant 0 : i32
    %c0_i32_1 = arith.constant 0 : i32
    return %c0_i32, %c0_i32_0 : i32, i32
  }
  func.func @transform_2(%arg0: i32) -> (i32, i32) {
    %c0_i32 = arith.constant 0 : i32
    %c0_i32_0 = arith.constant 0 : i32
    %c0_i32_1 = arith.constant 0 : i32
    return %c0_i32, %c0_i32_0 : i32, i32
  }
  func.func @transform_3(%arg0: i32) -> (i32, i32) {
    %c0_i32 = arith.constant 0 : i32
    %c0_i32_0 = arith.constant 0 : i32
    %c0_i32_1 = arith.constant 0 : i32
    return %c0_i32, %c0_i32_0 : i32, i32
  }
  func.func @transform_4(%arg0: i32) -> (i32, i32) {
    %c0_i32 = arith.constant 0 : i32
    %c0_i32_0 = arith.constant 0 : i32
    %c0_i32_1 = arith.constant 0 : i32
    return %c0_i32, %c0_i32_0 : i32, i32
  }
  func.func @transform_5(%arg0: i32) -> (i32, i32) {
    %c0_i32 = arith.constant 0 : i32
    %c0_i32_0 = arith.constant 0 : i32
    %c0_i32_1 = arith.constant 0 : i32
    return %c0_i32, %c0_i32_0 : i32, i32
  }
  func.func @transform_6(%arg0: i32) -> i32 {
    %c0_i32 = arith.constant 0 : i32
    %c0_i32_0 = arith.constant 0 : i32
    return %c0_i32 : i32
  }
  func.func @transform_7(%arg0: i32) -> (i32, i32) {
    %c0_i32 = arith.constant 0 : i32
    %c0_i32_0 = arith.constant 0 : i32
    return %c0_i32, %arg0 : i32, i32
  }
}

</mosaic_0001>

<llo_original>
// kernel: tpu_custom_call.1
$region0: #{tpu_custom_call.1}
  #allocation0 [shape = 'u32[]', space=smem, size = 0x4, offset = 0x4, fixed_abs, tag = 'smem constant byte address 0x4 - core index']
  #allocation1 [shape = 'u32[144,128]{1,0:T(1,128)}', space=vmem, size = 0x12000, scoped, tag = 'internal scratch']
  #allocation2 [shape = 'f32[1]{0:T(128)S(6)}', space=smem, size = 0x200, scoped, tag = 'scoped memory for tpu_custom_call.1']
  %s0 = inlined_call_operand.vmem [shape: f32[128,10], index: 0, kind: input, shape index: {}]
  %s1 = inlined_call_operand.vmem [shape: f32[32,10], index: 1, kind: input, shape index: {}]
  %s2 = inlined_call_operand.vmem [shape: f32[32,1], index: 2, kind: input, shape index: {}]
  %s3 = inlined_call_operand.vmem [shape: f32[16,32], index: 3, kind: input, shape index: {}]
  %s4 = inlined_call_operand.vmem [shape: f32[16,1], index: 4, kind: input, shape index: {}]
  %s5 = inlined_call_operand.vmem [shape: f32[16,1], index: 5, kind: input, shape index: {}]
  %s6 = inlined_call_operand.<no memory space> [shape: f32[1], index: 6, kind: input, shape index: {}]
  %s7 = inlined_call_operand.hbm [shape: f32[1,128], index: 7, kind: output, shape index: {}]
  %s8 = sld [smem:[#allocation0]]
  $region38: #{tpu_custom_call.1} parent=0
    _
  %s10 = ssub.s32 1, %s8
  %s11 = scalar_select 0, %s10, %s8
  %12 = sst [smem:[#allocation2]] %s6
  $region1: #{tpu_custom_call.1} parent=0
    #allocation3 [shape = 'u8[512]{0}', space=vmem, size = 0x400, scoped, tag = 'output window, operand 0, single buffered']
    #allocation4 [shape = 's32[1]{0}', space=sflag, size = 0x4, scoped, tag = 'scoped memory for tpu_custom_call.1']
    %13 = vsyncpa [#allocation4], 0
    // Predicated region
    $region2: #{tpu_custom_call.1} parent=1 // pred_check
      _
    $region3: #{tpu_custom_call.1} parent=1 // pred_check_branch
      %15 = sbr.rel (0) target = $region5
    $region4: #{tpu_custom_call.1} parent=1 // pred_region
      _
    $region5: #{tpu_custom_call.1} parent=1 // pred_fallthru
      _
    // Predicated region
    $region6: #{tpu_custom_call.1} parent=1 // pred_check
      _
    $region7: #{tpu_custom_call.1} parent=1 // pred_check_branch
      %17 = sbr.rel (0) target = $region9
    $region8: #{tpu_custom_call.1} parent=1 // pred_region
      _
    $region9: #{tpu_custom_call.1} parent=1 // pred_fallthru
      _
    // Predicated region
    $region10: #{tpu_custom_call.1} parent=1 // pred_check
      _
    $region11: #{tpu_custom_call.1} parent=1 // pred_check_branch
      %19 = sbr.rel (0) target = $region13
    $region12: #{tpu_custom_call.1} parent=1 // pred_region
      _
    $region13: #{tpu_custom_call.1} parent=1 // pred_fallthru
      _
    // Predicated region
    $region14: #{tpu_custom_call.1} parent=1 // pred_check
      _
    $region15: #{tpu_custom_call.1} parent=1 // pred_check_branch
      %21 = sbr.rel (0) target = $region17
    $region16: #{tpu_custom_call.1} parent=1 // pred_region
      _
    $region17: #{tpu_custom_call.1} parent=1 // pred_fallthru
      _
    // Predicated region
    $region18: #{tpu_custom_call.1} parent=1 // pred_check
      _
    $region19: #{tpu_custom_call.1} parent=1 // pred_check_branch
      %23 = sbr.rel (0) target = $region21
    $region20: #{tpu_custom_call.1} parent=1 // pred_region
      _
    $region21: #{tpu_custom_call.1} parent=1 // pred_fallthru
      _
    // Predicated region
    $region22: #{tpu_custom_call.1} parent=1 // pred_check
      _
    $region23: #{tpu_custom_call.1} parent=1 // pred_check_branch
      %25 = sbr.rel (0) target = $region25
    $region24: #{tpu_custom_call.1} parent=1 // pred_region
      _
    $region25: #{tpu_custom_call.1} parent=1 // pred_fallthru
      _
    // Predicated region
    $region26: #{tpu_custom_call.1} parent=1 // pred_check
      _
    $region27: #{tpu_custom_call.1} parent=1 // pred_check_branch
      %27 = sbr.rel (0) target = $region29
    $region28: #{tpu_custom_call.1} parent=1 // pred_region
      _
    $region29: #{tpu_custom_call.1} parent=1 // pred_fallthru
      _
    %v28 = vld [vmem:[%s0] sm:$0xff]
    %v29 = vld [vmem:[%s0 + $0x8] sm:$0xff]
    %v30 = vld [vmem:[%s0 + $0x10] sm:$0xff]
    %v31 = vld [vmem:[%s0 + $0x18] sm:$0xff]
    %v32 = vld [vmem:[%s0 + $0x20] sm:$0xff]
    %v33 = vld [vmem:[%s0 + $0x28] sm:$0xff]
    %v34 = vld [vmem:[%s0 + $0x30] sm:$0xff]
    %v35 = vld [vmem:[%s0 + $0x38] sm:$0xff]
    %v36 = vld [vmem:[%s0 + $0x40] sm:$0xff]
    %v37 = vld [vmem:[%s0 + $0x48] sm:$0xff]
    %v38 = vld [vmem:[%s0 + $0x50] sm:$0xff]
    %v39 = vld [vmem:[%s0 + $0x58] sm:$0xff]
    %v40 = vld [vmem:[%s0 + $0x60] sm:$0xff]
    %v41 = vld [vmem:[%s0 + $0x68] sm:$0xff]
    %v42 = vld [vmem:[%s0 + $0x70] sm:$0xff]
    %v43 = vld [vmem:[%s0 + $0x78] sm:$0xff]
    %v44 = vld [vmem:[%s1] sm:$0xff]
    %v45 = vld [vmem:[%s1 + $0x8] sm:$0xff]
    %v46 = vld [vmem:[%s1 + $0x10] sm:$0xff]
    %v47 = vld [vmem:[%s1 + $0x18] sm:$0xff]
    %v48 = vld [vmem:[%s2] sm:$0xff]
    %v49 = vld [vmem:[%s2 + $0x8] sm:$0xff]
    %v50 = vld [vmem:[%s2 + $0x10] sm:$0xff]
    %v51 = vld [vmem:[%s2 + $0x18] sm:$0xff]
    %53 = vset.pattern.permute.xlu0 0
    %54 = vperm.xlu0 %53, %v48
    %v55 = vpop.permute.xlu0 %54
    %58 = vset.pattern.permute.xlu0 0
    %59 = vperm.xlu0 %58, %v49
    %v60 = vpop.permute.xlu0 %59
    %63 = vset.pattern.permute.xlu0 0
    %64 = vperm.xlu0 %63, %v50
    %v65 = vpop.permute.xlu0 %64
    %68 = vset.pattern.permute.xlu0 0
    %69 = vperm.xlu0 %68, %v51
    %v70 = vpop.permute.xlu0 %69
    %vm72 = vcmask 80896
    %v74 = vsel %vm72, %v44, 0
    %v77 = vsel %vm72, %v45, 0
    %v80 = vsel %vm72, %v46, 0
    %v83 = vsel %vm72, %v47, 0
    %v86 = vsel %vm72, %v28, 0
    %v89 = vsel %vm72, %v29, 0
    %v92 = vsel %vm72, %v30, 0
    %v95 = vsel %vm72, %v31, 0
    %v98 = vsel %vm72, %v32, 0
    %v101 = vsel %vm72, %v33, 0
    %v104 = vsel %vm72, %v34, 0
    %v107 = vsel %vm72, %v35, 0
    %v110 = vsel %vm72, %v36, 0
    %v113 = vsel %vm72, %v37, 0
    %v116 = vsel %vm72, %v38, 0
    %v119 = vsel %vm72, %v39, 0
    %v122 = vsel %vm72, %v40, 0
    %v125 = vsel %vm72, %v41, 0
    %v128 = vsel %vm72, %v42, 0
    %v131 = vsel %vm72, %v43, 0
    %133 = vmatprep.subr.mxu0 0.0
    %134 = vmatpush1.xpose.msra.mxu0 %v131
    %135 = vmatprep.subr.mxu0 0.0
    %136 = vmatpush1.xpose.msra.mxu0 %v128
    %137 = vmatprep.subr.mxu0 0.0
    %138 = vmatpush1.xpose.msra.mxu0 %v125
    %139 = vmatprep.subr.mxu0 0.0
    %140 = vmatpush1.xpose.msra.mxu0 %v122
    %141 = vmatprep.subr.mxu0 0.0
    %142 = vmatpush1.xpose.msra.mxu0 %v119
    %143 = vmatprep.subr.mxu0 0.0
    %144 = vmatpush1.xpose.msra.mxu0 %v116
    %145 = vmatprep.subr.mxu0 0.0
    %146 = vmatpush1.xpose.msra.mxu0 %v113
    %147 = vmatprep.subr.mxu0 0.0
    %148 = vmatpush1.xpose.msra.mxu0 %v110
    %149 = vmatprep.subr.mxu0 0.0
    %150 = vmatpush1.xpose.msra.mxu0 %v107
    %151 = vmatprep.subr.mxu0 0.0
    %152 = vmatpush1.xpose.msra.mxu0 %v104
    %153 = vmatprep.subr.mxu0 0.0
    %154 = vmatpush1.xpose.msra.mxu0 %v101
    %155 = vmatprep.subr.mxu0 0.0
    %156 = vmatpush1.xpose.msra.mxu0 %v98
    %157 = vmatprep.subr.mxu0 0.0
    %158 = vmatpush1.xpose.msra.mxu0 %v95
    %159 = vmatprep.subr.mxu0 0.0
    %160 = vmatpush1.xpose.msra.mxu0 %v92
    %161 = vmatprep.subr.mxu0 0.0
    %162 = vmatpush1.xpose.msra.mxu0 %v89
    %163 = vmatprep.subr.mxu0 0.0
    %164 = vmatpush1.xpose.msra.mxu0 %v86
    %165 = vmatprep.subr.mxu0 0.0
    %166 = vmatpush2.xpose.msra.mxu0 0.0
    %167 = vmatprep.subr.mxu0 0.0
    %168 = vmatpush2.xpose.msra.mxu0 0.0
    %169 = vmatprep.subr.mxu0 0.0
    %170 = vmatpush2.xpose.msra.mxu0 0.0
    %171 = vmatprep.subr.mxu0 0.0
    %172 = vmatpush2.xpose.msra.mxu0 0.0
    %173 = vmatprep.subr.mxu0 0.0
    %174 = vmatpush2.xpose.msra.mxu0 0.0
    %175 = vmatprep.subr.mxu0 0.0
    %176 = vmatpush2.xpose.msra.mxu0 0.0
    %177 = vmatprep.subr.mxu0 0.0
    %178 = vmatpush2.xpose.msra.mxu0 0.0
    %179 = vmatprep.subr.mxu0 0.0
    %180 = vmatpush2.xpose.msra.mxu0 0.0
    %181 = vmatprep.subr.mxu0 0.0
    %182 = vmatpush2.xpose.msra.mxu0 0.0
    %183 = vmatprep.subr.mxu0 0.0
    %184 = vmatpush2.xpose.msra.mxu0 0.0
    %185 = vmatprep.subr.mxu0 0.0
    %186 = vmatpush2.xpose.msra.mxu0 0.0
    %187 = vmatprep.subr.mxu0 0.0
    %188 = vmatpush2.xpose.msra.mxu0 0.0
    %189 = vmatprep.subr.mxu0 0.0
    %190 = vmatpush2.xpose.msra.mxu0 0.0
    %191 = vmatprep.subr.mxu0 0.0
    %192 = vmatpush2.xpose.msra.mxu0 0.0
    %193 = vmatprep.subr.mxu0 0.0
    %194 = vmatpush2.xpose.msra.mxu0 0.0
    %195 = vmatprep.subr.mxu0 0.0
    %196 = vmatpush2.xpose.msra.mxu0 0.0
    %197 = vmatprep.mubr.f32.mxu0 0.0
    %198 = vmatmul.mubr.f32.gmra.mxu0 %v74
    %v199 = vpop.f32.mrf.mxu0
    %v200 = vadd.f32 %v55, %v199
    %v201 = vpop.f32.mrf.mxu0
    %202 = vmatprep.mubr.f32.mxu0 0.0
    %203 = vmatmul.mubr.f32.gmra.mxu0 %v77
    %v204 = vpop.f32.mrf.mxu0
    %v205 = vadd.f32 %v60, %v204
    %v206 = vpop.f32.mrf.mxu0
    %207 = vmatprep.mubr.f32.mxu0 0.0
    %208 = vmatmul.mubr.f32.gmra.mxu0 %v80
    %v209 = vpop.f32.mrf.mxu0
    %v210 = vadd.f32 %v65, %v209
    %v211 = vpop.f32.mrf.mxu0
    %212 = vmatprep.mubr.f32.mxu0 0.0
    %213 = vmatmul.mubr.f32.gmra.mxu0 %v83
    %v214 = vpop.f32.mrf.mxu0
    %v215 = vadd.f32 %v70, %v214
    %v216 = vpop.f32.mrf.mxu0
    %217 = vdwg.mxu0
    %v218 = vmax.f32 %v200, 0.0
    %v219 = vmax.f32 %v205, 0.0
    %v220 = vmax.f32 %v210, 0.0
    %v221 = vmax.f32 %v215, 0.0
    %v222 = vld [vmem:[%s3] sm:$0xff]
    %v223 = vld [vmem:[%s3 + $0x8] sm:$0xff]
    %v224 = vld [vmem:[%s4] sm:$0xff]
    %v225 = vld [vmem:[%s4 + $0x8] sm:$0xff]
    %227 = vset.pattern.permute.xlu0 0
    %228 = vperm.xlu0 %227, %v224
    %v229 = vpop.permute.xlu0 %228
    %232 = vset.pattern.permute.xlu0 0
    %233 = vperm.xlu0 %232, %v225
    %v234 = vpop.permute.xlu0 %233
    %vm236 = vcmask 261120
    %v238 = vsel %vm236, %v222, 0
    %v241 = vsel %vm236, %v223, 0
    %243 = vmatprep.subr.mxu0 0.0
    %244 = vmatpush1.msra.mxu0 0.0
    %245 = vmatprep.subr.mxu0 0.0
    %246 = vmatpush1.msra.mxu0 0.0
    %247 = vmatprep.subr.mxu0 0.0
    %248 = vmatpush1.msra.mxu0 0.0
    %249 = vmatprep.subr.mxu0 0.0
    %250 = vmatpush1.msra.mxu0 0.0
    %251 = vmatprep.subr.mxu0 0.0
    %252 = vmatpush1.msra.mxu0 0.0
    %253 = vmatprep.subr.mxu0 0.0
    %254 = vmatpush1.msra.mxu0 0.0
    %255 = vmatprep.subr.mxu0 0.0
    %256 = vmatpush1.msra.mxu0 0.0
    %257 = vmatprep.subr.mxu0 0.0
    %258 = vmatpush1.msra.mxu0 0.0
    %259 = vmatprep.subr.mxu0 0.0
    %260 = vmatpush1.msra.mxu0 0.0
    %261 = vmatprep.subr.mxu0 0.0
    %262 = vmatpush1.msra.mxu0 0.0
    %263 = vmatprep.subr.mxu0 0.0
    %264 = vmatpush1.msra.mxu0 0.0
    %265 = vmatprep.subr.mxu0 0.0
    %266 = vmatpush1.msra.mxu0 0.0
    %267 = vmatprep.subr.mxu0 0.0
    %268 = vmatpush1.msra.mxu0 %v221
    %269 = vmatprep.subr.mxu0 0.0
    %270 = vmatpush1.msra.mxu0 %v220
    %271 = vmatprep.subr.mxu0 0.0
    %272 = vmatpush1.msra.mxu0 %v219
    %273 = vmatprep.subr.mxu0 0.0
    %274 = vmatpush1.msra.mxu0 %v218
    %275 = vmatprep.subr.mxu0 0.0
    %276 = vmatpush2.msra.mxu0 0.0
    %277 = vmatprep.subr.mxu0 0.0
    %278 = vmatpush2.msra.mxu0 0.0
    %279 = vmatprep.subr.mxu0 0.0
    %280 = vmatpush2.msra.mxu0 0.0
    %281 = vmatprep.subr.mxu0 0.0
    %282 = vmatpush2.msra.mxu0 0.0
    %283 = vmatprep.subr.mxu0 0.0
    %284 = vmatpush2.msra.mxu0 0.0
    %285 = vmatprep.subr.mxu0 0.0
    %286 = vmatpush2.msra.mxu0 0.0
    %287 = vmatprep.subr.mxu0 0.0
    %288 = vmatpush2.msra.mxu0 0.0
    %289 = vmatprep.subr.mxu0 0.0
    %290 = vmatpush2.msra.mxu0 0.0
    %291 = vmatprep.subr.mxu0 0.0
    %292 = vmatpush2.msra.mxu0 0.0
    %293 = vmatprep.subr.mxu0 0.0
    %294 = vmatpush2.msra.mxu0 0.0
    %295 = vmatprep.subr.mxu0 0.0
    %296 = vmatpush2.msra.mxu0 0.0
    %297 = vmatprep.subr.mxu0 0.0
    %298 = vmatpush2.msra.mxu0 0.0
    %299 = vmatprep.subr.mxu0 0.0
    %300 = vmatpush2.msra.mxu0 0.0
    %301 = vmatprep.subr.mxu0 0.0
    %302 = vmatpush2.msra.mxu0 0.0
    %303 = vmatprep.subr.mxu0 0.0
    %304 = vmatpush2.msra.mxu0 0.0
    %305 = vmatprep.subr.mxu0 0.0
    %306 = vmatpush2.msra.mxu0 0.0
    %307 = vmatprep.mubr.f32.mxu0 0.0
    %308 = vmatmul.mubr.f32.gmra.mxu0 %v238
    %v309 = vpop.f32.mrf.mxu0
    %v310 = vadd.f32 %v229, %v309
    %v311 = vpop.f32.mrf.mxu0
    %312 = vmatprep.mubr.f32.mxu0 0.0
    %313 = vmatmul.mubr.f32.gmra.mxu0 %v241
    %v314 = vpop.f32.mrf.mxu0
    %v315 = vadd.f32 %v234, %v314
    %v316 = vpop.f32.mrf.mxu0
    %317 = vdwg.mxu0
    %v318 = vmax.f32 %v310, 0.0
    %v319 = vmax.f32 %v315, 0.0
    %v320 = vld [vmem:[%s5] sm:$0xff]
    %v321 = vld [vmem:[%s5 + $0x8] sm:$0xff]
    %323 = vset.pattern.permute.xlu0 0
    %324 = vperm.xlu0 %323, %v320
    %v325 = vpop.permute.xlu0 %324
    %328 = vset.pattern.permute.xlu0 0
    %329 = vperm.xlu0 %328, %v321
    %v330 = vpop.permute.xlu0 %329
    %v332 = vmul.f32 %v318, %v325
    %v333 = vmul.f32 %v319, %v330
    %v334 = vadd.f32 %v332, %v333
    %v335 = vrot.slane %v334, 4
    %v336 = vadd.f32 %v334, %v335
    %v337 = vrot.slane %v336, 2
    %v338 = vadd.f32 %v336, %v337
    %v339 = vrot.slane %v338, 1
    %v340 = vadd.f32 %v338, %v339
    %s341 = sld [smem:[#allocation2]]
    %v342 = vstv %s341
    %v343 = vadd.f32 %v340, %v342
    %v344 = vxor.u32 %v343, 2147483648
    %v345 = vmul.f32 %v344, 1.442695
    %v346 = vpow.pop %v345
    %v347 = vadd.f32 %v346, 1.0
    %v348 = vrcp.pop %v347
    %v349 = vmul.f32 1.0, %v348
    %350 = vst [vmem:[#allocation3] sm:$0x1] %v349
    // Predicated region
    $region30: #{tpu_custom_call.1} parent=1 // pred_check
      _
    $region31: #{tpu_custom_call.1} parent=1 // pred_check_branch
      %352 = sbr.rel (0) target = $region33
    $region32: #{tpu_custom_call.1} parent=1 // pred_region
      %s354 = ssub.s32 16, 16
      %355 = vsyncadd [#allocation4], %s354
      %s357 = sshll.u32 [#allocation3], 4
      %s358 = int_to_ptr.vmem [resolvable:$true] %s357
      %360 = dma.vmem_to_hbm [thread:$0]  %s358, 16, %s7, [#allocation4]
    $region33: #{tpu_custom_call.1} parent=1 // pred_fallthru
      _
    // Predicated region
    $region34: #{tpu_custom_call.1} parent=1 // pred_check
      _
    $region35: #{tpu_custom_call.1} parent=1 // pred_check_branch
      %362 = sbr.rel (0) target = $region37
    $region36: #{tpu_custom_call.1} parent=1 // pred_region
      %363 = dma.done [#allocation4], 16
    $region37: #{tpu_custom_call.1} parent=1 // pred_fallthru
      _
    %364 = vsyncpa [#allocation4], 1

</llo_original>
